<compile_context>
chip_gen: v6e
topology: v6e:2x2x1
jax: 0.10.0
libtpu: 0.0.40
codegen_flags: <defaults>
</compile_context>

<pallas_src>
import jax
import jax.numpy as jnp
from jax import lax
from jax.experimental import pallas as pl
from jax.experimental.pallas import tpu as pltpu

BN_EPS = 1e-5
L2_EPS = 1e-12  # PyTorch F.normalize default eps


def projection_head_kernel(x_ref, packed_ref, w2_hbm, o_ref, w2_vmem, sem):
    # Kick off the largest transfer (w2, dim_out x dim_out) immediately so it overlaps
    # with matmul-1 / BN stats / ReLU instead of sitting serially on the critical path.
    w2_copy = pltpu.make_async_copy(w2_hbm, w2_vmem, sem)
    w2_copy.start()

    x = x_ref[...].astype(jnp.float32)
    B, dim_in = x.shape
    inv_b = 1.0 / B  # compile-time constant

    # ---- unpack the small parameters (static ref slices: free) ----
    w1 = packed_ref[0:dim_in, :]                       # (dim_in, dim_out), 8-aligned start
    tail = packed_ref[dim_in:dim_in + 3, :]            # (3, dim_out): gamma / beta / b2
    gamma = tail[0:1, :]
    beta = tail[1:2, :]
    b2 = tail[2:3, :]

    # ---- Linear 1: (B, dim_in) @ (dim_in, dim_out) ----
    # (bias omitted: exactly cancelled by the train-mode BN mean subtraction below)
    h = jnp.dot(x, w1, preferred_element_type=jnp.float32)

    # ---- BatchNorm1d (training mode), single-pass stats + folded affine ----
    s1 = jnp.sum(h, axis=0, keepdims=True)
    s2 = jnp.sum(h * h, axis=0, keepdims=True)
    mean = s1 * inv_b
    var = jnp.maximum(s2 * inv_b - mean * mean, 0.0)   # biased variance, clamp fp roundoff
    scale = gamma * lax.rsqrt(var + BN_EPS)            # (1, dim_out)
    shift = beta - mean * scale                        # (1, dim_out)

    # ---- fused BN affine + ReLU ----
    h = jnp.maximum(h * scale + shift, 0.0)

    # ---- Linear 2: (B, dim_out) @ (dim_out, dim_out) + b2 ----
    w2_copy.wait()                                     # w2 must be VMEM-resident now
    out = jnp.dot(h, w2_vmem[...], preferred_element_type=jnp.float32) + b2

    # ---- L2 normalize along feature dim (dim=1): out / max(||out||, eps) ----
    ss = jnp.sum(out * out, axis=1, keepdims=True)
    inv_norm = lax.rsqrt(jnp.maximum(ss, L2_EPS * L2_EPS))
    o_ref[...] = (out * inv_norm).astype(o_ref.dtype)


def pack_params(params):
    """One-time packing of the small parameters into a single (dim_in+3, dim_out) buffer.

    b1 is dropped: train-mode BatchNorm subtracts the batch mean right after Linear-1,
    so the bias cancels exactly.  If the module is ever switched to eval mode / running
    stats, b1 must be reinstated.
    """
    w1, b1, gamma, beta, w2, b2 = params
    del b1
    packed = jnp.concatenate([w1, gamma, beta, b2], axis=0)  # (dim_in+3, dim_out)
    return packed, w2


def projection_head(x, packed, w2):
    """x: (B, dim_in) float32. packed: (dim_in+3, dim_out). w2: (dim_out, dim_out).

    Returns (B, dim_out) float32.

    The torch batch==1 repeat(2,1)/slice trick exists only so nn.BatchNorm1d does not
    error on a single training sample; mathematically two identical rows give zero batch
    variance and BN output == beta, which is exactly what this kernel computes for B == 1
    directly — so no tile/slice round-trip is needed.
    """
    B = x.shape[0]
    dim_out = w2.shape[1]

    return pl.pallas_call(
        projection_head_kernel,
        out_shape=jax.ShapeDtypeStruct((B, dim_out), jnp.float32),
        # whole problem fits in VMEM at these sizes: single invocation, full-array blocks
        in_specs=[
            pl.BlockSpec(memory_space=pltpu.MemorySpace.VMEM),   # x
            pl.BlockSpec(memory_space=pltpu.MemorySpace.VMEM),   # packed small params
            pl.BlockSpec(memory_space=pl.ANY),                   # w2 stays in HBM; manual DMA
        ],
        out_specs=pl.BlockSpec(memory_space=pltpu.MemorySpace.VMEM),
        scratch_shapes=[
            pltpu.VMEM((dim_out, dim_out), jnp.float32),         # w2 landing buffer
            pltpu.SemaphoreType.DMA(()),                         # its completion semaphore
        ],
    )(x, packed, w2)


def init_params(key, dim_in=16, dim_out=256):
    """Deterministic synthetic parameter init (torch-Linear-like uniform ranges)."""
    k1, k2, k3, k4 = jax.random.split(key, 4)
    bound1 = 1.0 / (dim_in ** 0.5)
    bound2 = 1.0 / (dim_out ** 0.5)
    # Linear weights stored as (in_features, out_features), i.e. transposed vs torch.
    w1 = jax.random.uniform(k1, (dim_in, dim_out), jnp.float32, -bound1, bound1)
    b1 = jax.random.uniform(k2, (1, dim_out), jnp.float32, -bound1, bound1)
    gamma = jnp.ones((1, dim_out), jnp.float32)   # BatchNorm1d weight
    beta = jnp.zeros((1, dim_out), jnp.float32)   # BatchNorm1d bias
    w2 = jax.random.uniform(k3, (dim_out, dim_out), jnp.float32, -bound2, bound2)
    b2 = jax.random.uniform(k4, (1, dim_out), jnp.float32, -bound2, bound2)
    return (w1, b1, gamma, beta, w2, b2)


def projection_head_ref(x, params):
    """Pure-JAX reference mirroring the torch module exactly (incl. b1 and the repeat)."""
    w1, b1, gamma, beta, w2, b2 = params
    ori_batch = x.shape[0]
    if ori_batch == 1:
        x = jnp.tile(x, (2, 1))
    h = x @ w1 + b1
    mean = jnp.mean(h, axis=0, keepdims=True)
    var = jnp.mean((h - mean) ** 2, axis=0, keepdims=True)
    h = (h - mean) / jnp.sqrt(var + BN_EPS) * gamma + beta
    h = jnp.maximum(h, 0.0)
    out = h @ w2 + b2
    norm = jnp.maximum(jnp.linalg.norm(out, axis=1, keepdims=True), L2_EPS)
    out = out / norm
    if ori_batch == 1:
        return out[0:1]
    return out


if __name__ == "__main__":
    dim_in, dim_out, batch = 16, 256, 8
    key = jax.random.PRNGKey(0)
    kx, kp = jax.random.split(key)

    params = init_params(kp, dim_in=dim_in, dim_out=dim_out)
    packed, w2 = pack_params(params)   # one-time packing, not per call
    x = jax.random.normal(kx, (batch, dim_in), jnp.float32)

    out = jax.block_until_ready(projection_head(x, packed, w2))
    ref = projection_head_ref(x, params)
    assert out.shape == (batch, dim_out), out.shape
    assert jnp.allclose(out, ref, atol=1e-5, rtol=1e-5), \
        float(jnp.max(jnp.abs(out - ref)))

    # batch==1 path (no wrapper-side repeat/slice; must match the torch repeat semantics)
    x1 = x[:1]
    out1 = jax.block_until_ready(projection_head(x1, packed, w2))
    ref1 = projection_head_ref(x1, params)
    assert out1.shape == (1, dim_out)
    assert jnp.allclose(out1, ref1, atol=1e-5, rtol=1e-5), \
        float(jnp.max(jnp.abs(out1 - ref1)))

    print("KERNEL_OK")
</pallas_src>

<mosaic_0001>
module attributes {stable_mosaic.version = 11 : i64} {
  func.func @projection_head_kernel(%arg0: memref<8x16xf32, #tpu.memory_space<vmem>>, %arg1: memref<19x256xf32, #tpu.memory_space<vmem>>, %arg2: memref<256x256xf32, #tpu.memory_space<any>>, %arg3: memref<8x256xf32, #tpu.memory_space<vmem>>, %arg4: memref<256x256xf32, #tpu.memory_space<vmem>>, %arg5: memref<!tpu.dma_semaphore, #tpu.memory_space<semaphore_mem>>) attributes {dimension_semantics = [], scalar_prefetch = 0 : i64, scratch_operands = 2 : i64, tpu.core_type = #tpu.core_type<tc>} {
    tpu.enqueue_dma source(%arg2 : memref<256x256xf32, #tpu.memory_space<any>>) target(%arg4 : memref<256x256xf32, #tpu.memory_space<vmem>>) target_semaphore(%arg5 : memref<!tpu.dma_semaphore, #tpu.memory_space<semaphore_mem>>)
    %c0 = arith.constant 0 : index
    %c0_0 = arith.constant 0 : index
    %0 = vector.load %arg0[%c0, %c0_0] : memref<8x16xf32, #tpu.memory_space<vmem>>, vector<8x16xf32>
    %c0_1 = arith.constant 0 : index
    %c0_2 = arith.constant 0 : index
    %1 = vector.load %arg1[%c0_1, %c0_2] : memref<19x256xf32, #tpu.memory_space<vmem>>, vector<16x256xf32>
    %c16 = arith.constant 16 : index
    %c0_3 = arith.constant 0 : index
    %2 = vector.load %arg1[%c16, %c0_3] : memref<19x256xf32, #tpu.memory_space<vmem>>, vector<3x256xf32>
    %3 = vector.extract_strided_slice %2 {offsets = [0, 0], sizes = [1, 256], strides = [1, 1]} : vector<3x256xf32> to vector<1x256xf32>
    %4 = vector.extract_strided_slice %2 {offsets = [1, 0], sizes = [1, 256], strides = [1, 1]} : vector<3x256xf32> to vector<1x256xf32>
    %5 = vector.extract_strided_slice %2 {offsets = [2, 0], sizes = [1, 256], strides = [1, 1]} : vector<3x256xf32> to vector<1x256xf32>
    %cst = arith.constant dense<0.000000e+00> : vector<8x256xf32>
    %6 = tpu.matmul %0, %1, %cst {dimension_numbers = #tpu.dot_dimension_numbers<[1], [0], [0], [1], [0, 0, 1, 1], [], []>} : vector<8x16xf32>, vector<16x256xf32>, vector<8x256xf32> -> vector<8x256xf32>
    %cst_4 = arith.constant dense<0.000000e+00> : vector<256xf32>
    %7 = vector.multi_reduction <add>, %6, %cst_4 [0] : vector<8x256xf32> to vector<256xf32>
    %8 = vector.shape_cast %7 : vector<256xf32> to vector<1x256xf32>
    %9 = arith.mulf %6, %6 : vector<8x256xf32>
    %cst_5 = arith.constant dense<0.000000e+00> : vector<256xf32>
    %10 = vector.multi_reduction <add>, %9, %cst_5 [0] : vector<8x256xf32> to vector<256xf32>
    %11 = vector.shape_cast %10 : vector<256xf32> to vector<1x256xf32>
    %cst_6 = arith.constant 1.250000e-01 : f32
    %12 = vector.broadcast %cst_6 : f32 to vector<1x256xf32>
    %13 = arith.mulf %8, %12 : vector<1x256xf32>
    %cst_7 = arith.constant 1.250000e-01 : f32
    %14 = vector.broadcast %cst_7 : f32 to vector<1x256xf32>
    %15 = arith.mulf %11, %14 : vector<1x256xf32>
    %16 = arith.mulf %13, %13 : vector<1x256xf32>
    %17 = arith.subf %15, %16 : vector<1x256xf32>
    %cst_8 = arith.constant 0.000000e+00 : f32
    %18 = vector.broadcast %cst_8 : f32 to vector<1x256xf32>
    %19 = arith.maximumf %17, %18 : vector<1x256xf32>
    %cst_9 = arith.constant 9.99999974E-6 : f32
    %20 = vector.broadcast %cst_9 : f32 to vector<1x256xf32>
    %21 = arith.addf %19, %20 : vector<1x256xf32>
    %22 = math.rsqrt %21 : vector<1x256xf32>
    %23 = arith.mulf %3, %22 : vector<1x256xf32>
    %24 = arith.mulf %13, %23 : vector<1x256xf32>
    %25 = arith.subf %4, %24 : vector<1x256xf32>
    %26 = vector.broadcast %23 : vector<1x256xf32> to vector<8x256xf32>
    %27 = arith.mulf %6, %26 : vector<8x256xf32>
    %28 = vector.broadcast %25 : vector<1x256xf32> to vector<8x256xf32>
    %29 = arith.addf %27, %28 : vector<8x256xf32>
    %cst_10 = arith.constant 0.000000e+00 : f32
    %30 = vector.broadcast %cst_10 : f32 to vector<8x256xf32>
    %31 = arith.maximumf %29, %30 : vector<8x256xf32>
    tpu.wait_dma2 semaphore(%arg5 : memref<!tpu.dma_semaphore, #tpu.memory_space<semaphore_mem>>) src(%arg2 : memref<256x256xf32, #tpu.memory_space<any>>) dst(%arg4 : memref<256x256xf32, #tpu.memory_space<vmem>>)
    %c0_11 = arith.constant 0 : index
    %c0_12 = arith.constant 0 : index
    %32 = vector.load %arg4[%c0_11, %c0_12] : memref<256x256xf32, #tpu.memory_space<vmem>>, vector<256x256xf32>
    %cst_13 = arith.constant dense<0.000000e+00> : vector<8x256xf32>
    %33 = tpu.matmul %31, %32, %cst_13 {dimension_numbers = #tpu.dot_dimension_numbers<[1], [0], [0], [1], [0, 0, 1, 1], [], []>} : vector<8x256xf32>, vector<256x256xf32>, vector<8x256xf32> -> vector<8x256xf32>
    %34 = vector.broadcast %5 : vector<1x256xf32> to vector<8x256xf32>
    %35 = arith.addf %33, %34 : vector<8x256xf32>
    %36 = arith.mulf %35, %35 : vector<8x256xf32>
    %cst_14 = arith.constant dense<0.000000e+00> : vector<8xf32>
    %37 = vector.multi_reduction <add>, %36, %cst_14 [1] : vector<8x256xf32> to vector<8xf32>
    %38 = vector.shape_cast %37 : vector<8xf32> to vector<8x1xf32>
    %cst_15 = arith.constant 1.000000e-24 : f32
    %39 = vector.broadcast %cst_15 : f32 to vector<8x1xf32>
    %40 = arith.maximumf %38, %39 : vector<8x1xf32>
    %41 = math.rsqrt %40 : vector<8x1xf32>
    %42 = vector.broadcast %41 : vector<8x1xf32> to vector<8x256xf32>
    %43 = arith.mulf %35, %42 : vector<8x256xf32>
    %c0_16 = arith.constant 0 : index
    %c0_17 = arith.constant 0 : index
    %44 = vector.load %arg3[%c0_16, %c0_17] : memref<8x256xf32, #tpu.memory_space<vmem>>, vector<8x256xf32>
    tpu.vector_store %arg3[%c0_16, %c0_17], %43 {strides = array<i32>} : memref<8x256xf32, #tpu.memory_space<vmem>>, vector<8x256xf32>,
    return
  }
}

</mosaic_0001>

<llo_original>
// kernel: tpu_custom_call.1
$region0: #{tpu_custom_call.1}
  #allocation0 [shape = 'u32[]', space=smem, size = 0x4, offset = 0x4, fixed_abs, tag = 'smem constant byte address 0x4 - core index']
  #allocation1 [shape = 'u32[144,128]{1,0:T(1,128)}', space=vmem, size = 0x12000, scoped, tag = 'internal scratch']
  #allocation2 [shape = 'f32[256,256]{1,0:T(8,128)}', space=vmem, size = 0x40000, scoped, tag = 'scratch operand']
  #allocation3 [shape = 's32[1]{0}', space=sflag, size = 0x4, scoped, tag = 'scratch operand']
  #allocation10 [shape = 's32[]', space=sflag, size = 0x4, offset = 0, fixed_abs, tag = 'sflag constant byte address 0x0 - dummy sync flag']
  #allocation11 [shape = 's32[]', space=sflag, size = 0x4, offset = 0, fixed_abs, tag = 'sflag constant byte address 0x0 - dummy sync flag']
  #allocation12 [shape = 'u32[]', space=smem, size = 0x4, offset = 0x44, fixed_abs, tag = 'smem constant byte address 0x44 - assertion arg 0']
  #allocation13 [shape = 'u32[]', space=smem, size = 0x4, offset = 0x48, fixed_abs, tag = 'smem constant byte address 0x48 - assertion arg 1']
  %s0 = inlined_call_operand.hbm [shape: f32[8,16], index: 0, kind: input, shape index: {}]
  %s1 = inlined_call_operand.hbm [shape: f32[19,256], index: 1, kind: input, shape index: {}]
  %s2 = inlined_call_operand.hbm [shape: f32[256,256], index: 2, kind: input, shape index: {}]
  %s3 = inlined_call_operand.hbm [shape: f32[8,256], index: 3, kind: output, shape index: {}]
  %s4 = sld [smem:[#allocation0]]
  $region30: #{tpu_custom_call.1} parent=0
    _
  %s6 = ssub.s32 1, %s4
  %s7 = scalar_select 0, %s6, %s4
  $region1: #{tpu_custom_call.1} parent=0
    #allocation4 [shape = 'u8[4096]{0}', space=vmem, size = 0x1000, scoped, tag = 'input window, operand 0, single buffered']
    #allocation5 [shape = 's32[1]{0}', space=sflag, size = 0x4, scoped, tag = 'scoped memory for tpu_custom_call.1']
    #allocation6 [shape = 's32[1]{0}', space=sflag, size = 0x4, scoped, tag = 'scoped memory for tpu_custom_call.1']
    #allocation7 [shape = 'u8[24576]{0}', space=vmem, size = 0x6000, scoped, tag = 'input window, operand 1, single buffered']
    #allocation8 [shape = 's32[1]{0}', space=sflag, size = 0x4, scoped, tag = 'scoped memory for tpu_custom_call.1']
    #allocation9 [shape = 'u8[8192]{0}', space=vmem, size = 0x2000, scoped, tag = 'output window, operand 0, single buffered']
    %8 = vsyncpa [#allocation5], 0
    %9 = vsyncpa [#allocation8], 0
    %10 = vsyncpa [#allocation6], 0
    // Predicated region
    $region2: #{tpu_custom_call.1} parent=1 // pred_check
      _
    $region3: #{tpu_custom_call.1} parent=1 // pred_check_branch
      %12 = sbr.rel (0) target = $region5
    $region4: #{tpu_custom_call.1} parent=1 // pred_region
      %s14 = ssub.s32 128, 128
      %15 = vsyncadd [#allocation5], %s14
      %s17 = sshll.u32 [#allocation4], 4
      %s18 = int_to_ptr.vmem [resolvable:$true] %s17
      %20 = dma.hbm_to_vmem [thread:$0]  %s0, 128, %s18, [#allocation5]
    $region5: #{tpu_custom_call.1} parent=1 // pred_fallthru
      _
    // Predicated region
    $region6: #{tpu_custom_call.1} parent=1 // pred_check
      _
    $region7: #{tpu_custom_call.1} parent=1 // pred_check_branch
      %22 = sbr.rel (0) target = $region9
    $region8: #{tpu_custom_call.1} parent=1 // pred_region
      %s24 = ssub.s32 768, 768
      %25 = vsyncadd [#allocation8], %s24
      %s26 = sshll.u32 [#allocation7], 4
      %s27 = int_to_ptr.vmem [resolvable:$true] %s26
      %32 = dma.hbm_to_vmem [thread:$0]  %s1, 768, %s27, [#allocation8], 256, 256, 16
    $region9: #{tpu_custom_call.1} parent=1 // pred_fallthru
      _
    // Predicated region
    $region10: #{tpu_custom_call.1} parent=1 // pred_check
      _
    $region11: #{tpu_custom_call.1} parent=1 // pred_check_branch
      %34 = sbr.rel (0) target = $region13
    $region12: #{tpu_custom_call.1} parent=1 // pred_region
      %35 = dma.done [#allocation5], 128
    $region13: #{tpu_custom_call.1} parent=1 // pred_fallthru
      _
    // Predicated region
    $region14: #{tpu_custom_call.1} parent=1 // pred_check
      _
    $region15: #{tpu_custom_call.1} parent=1 // pred_check_branch
      %37 = sbr.rel (0) target = $region17
    $region16: #{tpu_custom_call.1} parent=1 // pred_region
      %38 = dma.done [#allocation8], 768
    $region17: #{tpu_custom_call.1} parent=1 // pred_fallthru
      _
    // Predicated region
    $region18: #{tpu_custom_call.1} parent=1 // pred_check
      _
    $region19: #{tpu_custom_call.1} parent=1 // pred_check_branch
      %40 = sbr.rel target = $region21
    $region20: #{tpu_custom_call.1} parent=1 // pred_region
      %41 = sst [smem:[#allocation12]] [#allocation11]
      %42 = sst [smem:[#allocation13]] [#allocation10]
    $region21: #{tpu_custom_call.1} parent=1 // pred_fallthru
      _
    %44 = shalt.err (0)
    %s46 = sshll.u32 [#allocation2], 4
    %s47 = int_to_ptr.vmem [resolvable:$true] %s46
    %49 = dma.hbm_to_vmem [thread:$0]  %s2, 8192, %s47, [#allocation3]
    %v50 = vld [vmem:[#allocation4] sm:$0xff]
    %v51 = vld [vmem:[#allocation7] sm:$0xff]
    %v52 = vld [vmem:[#allocation7 + $0x8] sm:$0xff]
    %v53 = vld [vmem:[#allocation7 + $0x10] sm:$0xff]
    %v54 = vld [vmem:[#allocation7 + $0x18] sm:$0xff]
    %v55 = vld [vmem:[#allocation7 + $0x20] sm:$0x7]
    %v56 = vld [vmem:[#allocation7 + $0x28] sm:$0x7]
    %vm57 = vcmask 130048
    %v59 = vsel %vm57, %v50, 0
    %61 = vmatprep.subr.mxu0 0.0
    %62 = vmatpush1.msra.mxu0 0.0
    %63 = vmatprep.subr.mxu0 0.0
    %64 = vmatpush1.msra.mxu0 0.0
    %65 = vmatprep.subr.mxu0 0.0
    %66 = vmatpush1.msra.mxu0 0.0
    %67 = vmatprep.subr.mxu0 0.0
    %68 = vmatpush1.msra.mxu0 0.0
    %69 = vmatprep.subr.mxu0 0.0
    %70 = vmatpush1.msra.mxu0 0.0
    %71 = vmatprep.subr.mxu0 0.0
    %72 = vmatpush1.msra.mxu0 0.0
    %73 = vmatprep.subr.mxu0 0.0
    %74 = vmatpush1.msra.mxu0 0.0
    %75 = vmatprep.subr.mxu0 0.0
    %76 = vmatpush1.msra.mxu0 0.0
    %77 = vmatprep.subr.mxu0 0.0
    %78 = vmatpush1.msra.mxu0 0.0
    %79 = vmatprep.subr.mxu0 0.0
    %80 = vmatpush1.msra.mxu0 0.0
    %81 = vmatprep.subr.mxu0 0.0
    %82 = vmatpush1.msra.mxu0 0.0
    %83 = vmatprep.subr.mxu0 0.0
    %84 = vmatpush1.msra.mxu0 0.0
    %85 = vmatprep.subr.mxu0 0.0
    %86 = vmatpush1.msra.mxu0 0.0
    %87 = vmatprep.subr.mxu0 0.0
    %88 = vmatpush1.msra.mxu0 0.0
    %89 = vmatprep.subr.mxu0 %v54
    %90 = vmatpush1.msra.mxu0 %v53
    %91 = vmatprep.subr.mxu0 %v52
    %92 = vmatpush1.msra.mxu0 %v51
    %93 = vmatprep.subr.mxu0 0.0
    %94 = vmatpush2.msra.mxu0 0.0
    %95 = vmatprep.subr.mxu0 0.0
    %96 = vmatpush2.msra.mxu0 0.0
    %97 = vmatprep.subr.mxu0 0.0
    %98 = vmatpush2.msra.mxu0 0.0
    %99 = vmatprep.subr.mxu0 0.0
    %100 = vmatpush2.msra.mxu0 0.0
    %101 = vmatprep.subr.mxu0 0.0
    %102 = vmatpush2.msra.mxu0 0.0
    %103 = vmatprep.subr.mxu0 0.0
    %104 = vmatpush2.msra.mxu0 0.0
    %105 = vmatprep.subr.mxu0 0.0
    %106 = vmatpush2.msra.mxu0 0.0
    %107 = vmatprep.subr.mxu0 0.0
    %108 = vmatpush2.msra.mxu0 0.0
    %109 = vmatprep.subr.mxu0 0.0
    %110 = vmatpush2.msra.mxu0 0.0
    %111 = vmatprep.subr.mxu0 0.0
    %112 = vmatpush2.msra.mxu0 0.0
    %113 = vmatprep.subr.mxu0 0.0
    %114 = vmatpush2.msra.mxu0 0.0
    %115 = vmatprep.subr.mxu0 0.0
    %116 = vmatpush2.msra.mxu0 0.0
    %117 = vmatprep.subr.mxu0 0.0
    %118 = vmatpush2.msra.mxu0 0.0
    %119 = vmatprep.subr.mxu0 0.0
    %120 = vmatpush2.msra.mxu0 0.0
    %121 = vmatprep.subr.mxu0 0.0
    %122 = vmatpush2.msra.mxu0 0.0
    %123 = vmatprep.subr.mxu0 0.0
    %124 = vmatpush2.msra.mxu0 0.0
    %125 = vmatprep.mubr.f32.mxu0 0.0
    %126 = vmatmul.mubr.f32.gmra.mxu0 %v59
    %v127 = vpop.f32.mrf.mxu0
    %v128 = vadd.f32 0.0, %v127
    %v129 = vpop.f32.mrf.mxu0
    %v130 = vadd.f32 0.0, %v129
    %131 = vdwg.mxu0
    %v132 = vrot.slane %v128, 4
    %v133 = vadd.f32 %v128, %v132
    %v134 = vrot.slane %v133, 2
    %v135 = vadd.f32 %v133, %v134
    %v136 = vrot.slane %v135, 1
    %v137 = vadd.f32 %v135, %v136
    %v138 = vrot.slane %v130, 4
    %v139 = vadd.f32 %v130, %v138
    %v140 = vrot.slane %v139, 2
    %v141 = vadd.f32 %v139, %v140
    %v142 = vrot.slane %v141, 1
    %v143 = vadd.f32 %v141, %v142
    %v144 = vmul.f32 %v128, %v128
    %v145 = vmul.f32 %v130, %v130
    %v146 = vrot.slane %v144, 4
    %v147 = vadd.f32 %v144, %v146
    %v148 = vrot.slane %v147, 2
    %v149 = vadd.f32 %v147, %v148
    %v150 = vrot.slane %v149, 1
    %v151 = vadd.f32 %v149, %v150
    %v152 = vrot.slane %v145, 4
    %v153 = vadd.f32 %v145, %v152
    %v154 = vrot.slane %v153, 2
    %v155 = vadd.f32 %v153, %v154
    %v156 = vrot.slane %v155, 1
    %v157 = vadd.f32 %v155, %v156
    %v158 = vmul.f32 %v137, 0.125
    %v159 = vmul.f32 %v143, 0.125
    %v160 = vmul.f32 %v151, 0.125
    %v161 = vmul.f32 %v157, 0.125
    %v162 = vmul.f32 %v158, %v158
    %v163 = vmul.f32 %v159, %v159
    %v164 = vsub.f32 %v160, %v162
    %v165 = vsub.f32 %v161, %v163
    %v166 = vmax.f32 %v164, 0.0
    %v167 = vmax.f32 %v165, 0.0
    %v168 = vadd.f32 %v166, 1e-05
    %v169 = vadd.f32 %v167, 1e-05
    %v170 = vrsqrt.pop %v168
    %v171 = vrsqrt.pop %v169
    %v172 = vmul.f32 %v55, %v170
    %v173 = vmul.f32 %v56, %v171
    %v174 = vmul.f32 %v158, %v172
    %v175 = vmul.f32 %v159, %v173
    %v178 = vrot.slane %v174, 7
    %v179 = vrot.slane %v175, 7
    %v182 = vsub.f32 %v55, %v178
    %v183 = vsub.f32 %v56, %v179
    %v184 = vlaneseq
    %v185 = vshrl.u32 %v184, 7
    %v186 = vsub.s32 0, %v185
    %v187 = vrot.slane %v172, %v186
    %v188 = vlaneseq
    %v189 = vshrl.u32 %v188, 7
    %v190 = vsub.s32 0, %v189
    %v191 = vrot.slane %v173, %v190
    %v192 = vmul.f32 %v128, %v187
    %v193 = vmul.f32 %v130, %v191
    %v194 = vlaneseq
    %v195 = vshrl.u32 %v194, 7
    %v196 = vsub.s32 1, %v195
    %v197 = vrot.slane %v182, %v196
    %v198 = vlaneseq
    %v199 = vshrl.u32 %v198, 7
    %v200 = vsub.s32 1, %v199
    %v201 = vrot.slane %v183, %v200
    %v202 = vadd.f32 %v192, %v197
    %v203 = vadd.f32 %v193, %v201
    %v204 = vmax.f32 %v202, 0.0
    %v205 = vmax.f32 %v203, 0.0
    %s206 = smul.u32 8, 32
    %s207 = smul.u32 %s206, 2
    %s208 = sshll.u32 %s207, 4
    %209 = dma.done [#allocation3], %s208
    %v210 = vld [vmem:[#allocation2] sm:$0xff]
    %v211 = vld [vmem:[#allocation2 + $0x8] sm:$0xff]
    %v212 = vld [vmem:[#allocation2 + $0x10] sm:$0xff]
    %v213 = vld [vmem:[#allocation2 + $0x18] sm:$0xff]
    %v214 = vld [vmem:[#allocation2 + $0x20] sm:$0xff]
    %v215 = vld [vmem:[#allocation2 + $0x28] sm:$0xff]
    %v216 = vld [vmem:[#allocation2 + $0x30] sm:$0xff]
    %v217 = vld [vmem:[#allocation2 + $0x38] sm:$0xff]
    %v218 = vld [vmem:[#allocation2 + $0x40] sm:$0xff]
    %v219 = vld [vmem:[#allocation2 + $0x48] sm:$0xff]
    %v220 = vld [vmem:[#allocation2 + $0x50] sm:$0xff]
    %v221 = vld [vmem:[#allocation2 + $0x58] sm:$0xff]
    %v222 = vld [vmem:[#allocation2 + $0x60] sm:$0xff]
    %v223 = vld [vmem:[#allocation2 + $0x68] sm:$0xff]
    %v224 = vld [vmem:[#allocation2 + $0x70] sm:$0xff]
    %v225 = vld [vmem:[#allocation2 + $0x78] sm:$0xff]
    %v226 = vld [vmem:[#allocation2 + $0x80] sm:$0xff]
    %v227 = vld [vmem:[#allocation2 + $0x88] sm:$0xff]
    %v228 = vld [vmem:[#allocation2 + $0x90] sm:$0xff]
    %v229 = vld [vmem:[#allocation2 + $0x98] sm:$0xff]
    %v230 = vld [vmem:[#allocation2 + $0xa0] sm:$0xff]
    %v231 = vld [vmem:[#allocation2 + $0xa8] sm:$0xff]
    %v232 = vld [vmem:[#allocation2 + $0xb0] sm:$0xff]
    %v233 = vld [vmem:[#allocation2 + $0xb8] sm:$0xff]
    %v234 = vld [vmem:[#allocation2 + $0xc0] sm:$0xff]
    %v235 = vld [vmem:[#allocation2 + $0xc8] sm:$0xff]
    %v236 = vld [vmem:[#allocation2 + $0xd0] sm:$0xff]
    %v237 = vld [vmem:[#allocation2 + $0xd8] sm:$0xff]
    %v238 = vld [vmem:[#allocation2 + $0xe0] sm:$0xff]
    %v239 = vld [vmem:[#allocation2 + $0xe8] sm:$0xff]
    %v240 = vld [vmem:[#allocation2 + $0xf0] sm:$0xff]
    %v241 = vld [vmem:[#allocation2 + $0xf8] sm:$0xff]
    %v242 = vld [vmem:[#allocation2 + $0x100] sm:$0xff]
    %v243 = vld [vmem:[#allocation2 + $0x108] sm:$0xff]
    %v244 = vld [vmem:[#allocation2 + $0x110] sm:$0xff]
    %v245 = vld [vmem:[#allocation2 + $0x118] sm:$0xff]
    %v246 = vld [vmem:[#allocation2 + $0x120] sm:$0xff]
    %v247 = vld [vmem:[#allocation2 + $0x128] sm:$0xff]
    %v248 = vld [vmem:[#allocation2 + $0x130] sm:$0xff]
    %v249 = vld [vmem:[#allocation2 + $0x138] sm:$0xff]
    %v250 = vld [vmem:[#allocation2 + $0x140] sm:$0xff]
    %v251 = vld [vmem:[#allocation2 + $0x148] sm:$0xff]
    %v252 = vld [vmem:[#allocation2 + $0x150] sm:$0xff]
    %v253 = vld [vmem:[#allocation2 + $0x158] sm:$0xff]
    %v254 = vld [vmem:[#allocation2 + $0x160] sm:$0xff]
    %v255 = vld [vmem:[#allocation2 + $0x168] sm:$0xff]
    %v256 = vld [vmem:[#allocation2 + $0x170] sm:$0xff]
    %v257 = vld [vmem:[#allocation2 + $0x178] sm:$0xff]
    %v258 = vld [vmem:[#allocation2 + $0x180] sm:$0xff]
    %v259 = vld [vmem:[#allocation2 + $0x188] sm:$0xff]
    %v260 = vld [vmem:[#allocation2 + $0x190] sm:$0xff]
    %v261 = vld [vmem:[#allocation2 + $0x198] sm:$0xff]
    %v262 = vld [vmem:[#allocation2 + $0x1a0] sm:$0xff]
    %v263 = vld [vmem:[#allocation2 + $0x1a8] sm:$0xff]
    %v264 = vld [vmem:[#allocation2 + $0x1b0] sm:$0xff]
    %v265 = vld [vmem:[#allocation2 + $0x1b8] sm:$0xff]
    %v266 = vld [vmem:[#allocation2 + $0x1c0] sm:$0xff]
    %v267 = vld [vmem:[#allocation2 + $0x1c8] sm:$0xff]
    %v268 = vld [vmem:[#allocation2 + $0x1d0] sm:$0xff]
    %v269 = vld [vmem:[#allocation2 + $0x1d8] sm:$0xff]
    %v270 = vld [vmem:[#allocation2 + $0x1e0] sm:$0xff]
    %v271 = vld [vmem:[#allocation2 + $0x1e8] sm:$0xff]
    %v272 = vld [vmem:[#allocation2 + $0x1f0] sm:$0xff]
    %v273 = vld [vmem:[#allocation2 + $0x1f8] sm:$0xff]
    %v274 = vlaneseq
    %v275 = vshrl.u32 %v274, 7
    %v276 = vsub.s32 2, %v275
    %v277 = vrot.slane %v55, %v276
    %v278 = vlaneseq
    %v279 = vshrl.u32 %v278, 7
    %v280 = vsub.s32 2, %v279
    %v281 = vrot.slane %v56, %v280
    %282 = vmatprep.subr.mxu0 %v241
    %283 = vmatpush1.msra.mxu0 %v240
    %284 = vmatprep.subr.mxu0 %v239
    %285 = vmatpush1.msra.mxu0 %v238
    %286 = vmatprep.subr.mxu0 %v237
    %287 = vmatpush1.msra.mxu0 %v236
    %288 = vmatprep.subr.mxu0 %v235
    %289 = vmatpush1.msra.mxu0 %v234
    %290 = vmatprep.subr.mxu0 %v233
    %291 = vmatpush1.msra.mxu0 %v232
    %292 = vmatprep.subr.mxu0 %v231
    %293 = vmatpush1.msra.mxu0 %v230
    %294 = vmatprep.subr.mxu0 %v229
    %295 = vmatpush1.msra.mxu0 %v228
    %296 = vmatprep.subr.mxu0 %v227
    %297 = vmatpush1.msra.mxu0 %v226
    %298 = vmatprep.subr.mxu0 %v225
    %299 = vmatpush1.msra.mxu0 %v224
    %300 = vmatprep.subr.mxu0 %v223
    %301 = vmatpush1.msra.mxu0 %v222
    %302 = vmatprep.subr.mxu0 %v221
    %303 = vmatpush1.msra.mxu0 %v220
    %304 = vmatprep.subr.mxu0 %v219
    %305 = vmatpush1.msra.mxu0 %v218
    %306 = vmatprep.subr.mxu0 %v217
    %307 = vmatpush1.msra.mxu0 %v216
    %308 = vmatprep.subr.mxu0 %v215
    %309 = vmatpush1.msra.mxu0 %v214
    %310 = vmatprep.subr.mxu0 %v213
    %311 = vmatpush1.msra.mxu0 %v212
    %312 = vmatprep.subr.mxu0 %v211
    %313 = vmatpush1.msra.mxu0 %v210
    %314 = vmatprep.subr.mxu0 %v273
    %315 = vmatpush2.msra.mxu0 %v272
    %316 = vmatprep.subr.mxu0 %v271
    %317 = vmatpush2.msra.mxu0 %v270
    %318 = vmatprep.subr.mxu0 %v269
    %319 = vmatpush2.msra.mxu0 %v268
    %320 = vmatprep.subr.mxu0 %v267
    %321 = vmatpush2.msra.mxu0 %v266
    %322 = vmatprep.subr.mxu0 %v265
    %323 = vmatpush2.msra.mxu0 %v264
    %324 = vmatprep.subr.mxu0 %v263
    %325 = vmatpush2.msra.mxu0 %v262
    %326 = vmatprep.subr.mxu0 %v261
    %327 = vmatpush2.msra.mxu0 %v260
    %328 = vmatprep.subr.mxu0 %v259
    %329 = vmatpush2.msra.mxu0 %v258
    %330 = vmatprep.subr.mxu0 %v257
    %331 = vmatpush2.msra.mxu0 %v256
    %332 = vmatprep.subr.mxu0 %v255
    %333 = vmatpush2.msra.mxu0 %v254
    %334 = vmatprep.subr.mxu0 %v253
    %335 = vmatpush2.msra.mxu0 %v252
    %336 = vmatprep.subr.mxu0 %v251
    %337 = vmatpush2.msra.mxu0 %v250
    %338 = vmatprep.subr.mxu0 %v249
    %339 = vmatpush2.msra.mxu0 %v248
    %340 = vmatprep.subr.mxu0 %v247
    %341 = vmatpush2.msra.mxu0 %v246
    %342 = vmatprep.subr.mxu0 %v245
    %343 = vmatpush2.msra.mxu0 %v244
    %344 = vmatprep.subr.mxu0 %v243
    %345 = vmatpush2.msra.mxu0 %v242
    %346 = vmatprep.mubr.f32.mxu0 %v205
    %347 = vmatmul.mubr.f32.gmra.mxu0 %v204
    %v348 = vpop.f32.mrf.mxu0
    %v349 = vadd.f32 %v277, %v348
    %v350 = vpop.f32.mrf.mxu0
    %v351 = vadd.f32 %v281, %v350
    %352 = vdwg.mxu0
    %v353 = vmul.f32 %v349, %v349
    %v354 = vmul.f32 %v351, %v351
    %v355 = vadd.f32 %v353, %v354
    %356 = vadd.xlane.f32.xlu0 %v355
    %v357 = vpop.xlane.xlu0 %356
    %v358 = vmax.f32 %v357, 1e-24
    %v359 = vrsqrt.pop %v358
    %v360 = vmul.f32 %v349, %v359
    %v361 = vmul.f32 %v351, %v359
    %362 = vst [vmem:[#allocation9] sm:$0xff] %v360
    %363 = vst [vmem:[#allocation9 + $0x8] sm:$0xff] %v361
    // Predicated region
    $region22: #{tpu_custom_call.1} parent=1 // pred_check
      _
    $region23: #{tpu_custom_call.1} parent=1 // pred_check_branch
      %365 = sbr.rel (0) target = $region25
    $region24: #{tpu_custom_call.1} parent=1 // pred_region
      %s367 = ssub.s32 256, 256
      %368 = vsyncadd [#allocation6], %s367
      %s370 = sshll.u32 [#allocation9], 4
      %s371 = int_to_ptr.vmem [resolvable:$true] %s370
      %373 = dma.vmem_to_hbm [thread:$0]  %s371, 256, %s3, [#allocation6]
    $region25: #{tpu_custom_call.1} parent=1 // pred_fallthru
      _
    // Predicated region
    $region26: #{tpu_custom_call.1} parent=1 // pred_check
      _
    $region27: #{tpu_custom_call.1} parent=1 // pred_check_branch
      %375 = sbr.rel (0) target = $region29
    $region28: #{tpu_custom_call.1} parent=1 // pred_region
      %376 = dma.done [#allocation6], 256
    $region29: #{tpu_custom_call.1} parent=1 // pred_fallthru
      _
    %377 = vsyncpa [#allocation5], 1
    %378 = vsyncpa [#allocation8], 1
    %379 = vsyncpa [#allocation6], 1
  %380 = vsyncmov [#allocation3]
  %s381 = vpop.sfrf %380
  %p382 = scmp.eq.s32.totalorder %s381, 0
  %p383 = pneg %p382
  %385 = shalt.err (%p383)

</llo_original>
